<compile_context>
chip_gen: v7x
topology: tpu7x:2x2x1
jax: 0.10.0
libtpu: 0.0.40
codegen_flags: <defaults>
</compile_context>

<pallas_src>
import jax
import jax.numpy as jnp
import numpy as np
from jax.experimental import pallas as pl
from jax.experimental.pallas import tpu as pltpu

EPS = 1e-5


def gfem_kernel(x_ref, w1t_ref, aff_ref, o_ref):
    """One grid step over a tile of Bt batch rows.

    x_ref:   (Bt, C, L)  input tile, PyTorch NCW order (f32 or bf16)
    w1t_ref: (3, C)      Conv1d(num_classes->1, k=3) weights, tap-major
    aff_ref: (6, L)      folded rows: [scale1, shift1, scale2, shift2,
                                       edge_mask_lo, edge_mask_hi]
    o_ref:   (Bt, L)     output tile (lane-dense 2-D slab)
    """
    x = x_ref[...].astype(jnp.float32)                      # (Bt, C, L)
    Bt = x.shape[0]
    L = x.shape[-1]

    # Channel contraction on the MXU: one batched matmul yields all three
    # k=3 tap planes at once:  u[b, k, l] = sum_c w1[c, k] * x[b, c, l].
    w1b = jnp.broadcast_to(w1t_ref[...], (Bt,) + w1t_ref.shape)   # (Bt, 3, C)
    u = jax.lax.dot_general(
        w1b, x,
        dimension_numbers=(((2,), (1,)), ((0,), (0,))),     # contract C, batch Bt
        preferred_element_type=jnp.float32,
    )                                                       # (Bt, 3, L)

    def tap(k):
        # (Bt, 3, L) -> (Bt, L) via a size-1 sublane reduction (same reduction
        # machinery as a plain channel sum; avoids an explicit squeeze).
        return jnp.sum(u[:, k:k + 1, :], axis=1)

    u_m1 = tap(0)                                           # weights on x[l-1]
    u_c = tap(1)                                            # weights on x[l]
    u_p1 = tap(2)                                           # weights on x[l+1]

    s1 = aff_ref[0:1, :]                                    # (1, L)
    t1 = aff_ref[1:2, :]
    s2 = aff_ref[2:3, :]
    t2 = aff_ref[3:4, :]
    mask_lo = aff_ref[4:5, :]                               # zero at l == 0
    mask_hi = aff_ref[5:6, :]                               # zero at l == L-1

    # k=3, pad=1 conv: conv[l] = u_m1[l-1] + u_c[l] + u_p1[l+1], zero-padded
    # at the edges.  pltpu.roll wraps, so the precomputed edge masks zero the
    # wrapped column (folded into the aff table -> no per-step iota/where).
    conv = u_c
    conv = conv + mask_lo * pltpu.roll(u_m1, shift=1, axis=1)
    conv = conv + mask_hi * pltpu.roll(u_p1, shift=L - 1, axis=1)

    # bias1 + BN1(eval) + ReLU, then 1x1 conv + BN2(eval) + ReLU, folded into
    # two per-position affines.
    y1 = jnp.maximum(s1 * conv + t1, 0.0)                   # (Bt, L)
    y2 = jnp.maximum(s2 * y1 + t2, 0.0)                     # (Bt, L)

    o_ref[...] = y2.astype(o_ref.dtype)


def gfem_forward(x, params, *, block_b=32, input_dtype=None):
    """GFEM forward.  x: (B, C, L).  Returns (B, 1, L) float32.

    block_b:     batch rows per grid step (tune per generation; 32-64 typical).
    input_dtype: optionally cast x (e.g. jnp.bfloat16) before the pallas_call
                 to halve HBM read bytes; in-kernel compute stays float32.
    """
    B, C, L = x.shape
    if input_dtype is not None and x.dtype != input_dtype:
        x = x.astype(input_dtype)

    w1 = jnp.asarray(params["w1"], jnp.float32)             # (C, 3)
    b1 = jnp.float32(params["b1"])
    w2 = jnp.float32(params["w2"])
    b2 = jnp.float32(params["b2"])
    g1, be1, m1, v1 = [jnp.asarray(p, jnp.float32) for p in params["bn1"]]
    g2, be2, m2, v2 = [jnp.asarray(p, jnp.float32) for p in params["bn2"]]

    # Fold eval-mode BN stats, both conv biases and the 1x1 conv weight into
    # per-position affines:
    #   y1 = relu(scale1 * conv_raw + shift1)
    #   y2 = relu(scale2 * y1       + shift2)
    scale1 = g1 / jnp.sqrt(v1 + EPS)
    shift1 = scale1 * b1 + (be1 - m1 * scale1)
    scale2_bn = g2 / jnp.sqrt(v2 + EPS)
    scale2 = scale2_bn * w2
    shift2 = scale2_bn * b2 + (be2 - m2 * scale2_bn)

    # Edge masks for the wrapped rolls (replaces per-step iota + where).
    lane = jnp.arange(L, dtype=jnp.float32)
    mask_lo = (lane != 0).astype(jnp.float32)
    mask_hi = (lane != L - 1).astype(jnp.float32)

    aff = jnp.stack([scale1, shift1, scale2, shift2, mask_lo, mask_hi], axis=0)  # (6, L)
    w1t = w1.T                                                                   # (3, C)

    # ---- Batch tiling -------------------------------------------------------
    Bt = min(block_b, B)
    # v7x has two TensorCores sharding the "parallel" batch axis: keep >= 2
    # grid steps whenever the batch is big enough for sublane-friendly tiles.
    if B >= 16 and Bt > (B + 1) // 2:
        Bt = (B + 1) // 2
    if Bt >= 8:
        Bt = (Bt // 8) * 8                                  # sublane-aligned tiles
    Bt = max(Bt, 1)
    pad = (-B) % Bt
    xp = jnp.pad(x, ((0, pad), (0, 0), (0, 0))) if pad else x
    Bp = B + pad

    # VMEM budget: double-buffered x block + in-kernel f32 copy + small temps,
    # with headroom; clamp to [16 MiB, 64 MiB] (v7x physical ceiling).
    itemsize = jnp.dtype(xp.dtype).itemsize
    x_block_bytes = Bt * C * L * itemsize
    work_bytes = Bt * C * L * 4
    small_bytes = 32 * Bt * L * 4 + 2 * (3 * C + 6 * L) * 4
    vmem_limit = int(min(max(2 * x_block_bytes + work_bytes + small_bytes + (4 << 20),
                             16 << 20), 64 << 20))

    out2d = pl.pallas_call(
        gfem_kernel,
        out_shape=jax.ShapeDtypeStruct((Bp, L), jnp.float32),
        grid=(Bp // Bt,),
        in_specs=[
            pl.BlockSpec((Bt, C, L), lambda b: (b, 0, 0)),   # batch tile of x
            pl.BlockSpec((3, C), lambda b: (0, 0)),          # conv1 weights (tiny, resident)
            pl.BlockSpec((6, L), lambda b: (0, 0)),          # folded affines + edge masks
        ],
        out_specs=pl.BlockSpec((Bt, L), lambda b: (b, 0)),   # lane-dense output slab
        compiler_params=pltpu.CompilerParams(
            # Batch axis shards across v7x's two TensorCores; switch to
            # pltpu.CORE_PARALLEL if a profile shows single-core execution.
            dimension_semantics=("parallel",),
            vmem_limit_bytes=vmem_limit,
        ),
    )(xp, w1t, aff)

    return out2d[:B].reshape(B, 1, L)


def gfem_reference(x, params):
    """Pure-JAX (XLA) reference of the same forward pass, un-folded math."""
    B, C, L = x.shape
    hi = jax.lax.Precision.HIGHEST
    w1 = jnp.asarray(params["w1"], jnp.float32)
    b1 = params["b1"]
    w2 = params["w2"]
    b2 = params["b2"]
    g1, be1, m1, v1 = params["bn1"]
    g2, be2, m2, v2 = params["bn2"]

    xf = x.astype(jnp.float32)
    xpad = jnp.pad(xf, ((0, 0), (0, 0), (1, 1)))
    conv = (jnp.einsum("bcl,c->bl", xpad[:, :, 0:L], w1[:, 0], precision=hi) +
            jnp.einsum("bcl,c->bl", xpad[:, :, 1:L + 1], w1[:, 1], precision=hi) +
            jnp.einsum("bcl,c->bl", xpad[:, :, 2:L + 2], w1[:, 2], precision=hi) + b1)

    y1 = g1 * (conv - m1) / jnp.sqrt(v1 + EPS) + be1
    y1 = jnp.maximum(y1, 0.0)
    z = w2 * y1 + b2
    y2 = g2 * (z - m2) / jnp.sqrt(v2 + EPS) + be2
    y2 = jnp.maximum(y2, 0.0)
    return y2[:, None, :]                                    # (B, 1, L)


if __name__ == "__main__":
    B, C, L = 16, 8, 32          # batch, num_classes, in_dim

    key = jax.random.PRNGKey(0)
    keys = jax.random.split(key, 10)

    # Round x and the conv weights to bf16-representable values so the strict
    # correctness check is insensitive to MXU input precision.
    x = jax.random.normal(keys[0], (B, C, L), jnp.float32)
    x = x.astype(jnp.bfloat16).astype(jnp.float32)
    w1 = 0.1 * jax.random.normal(keys[1], (C, 3), jnp.float32)
    w1 = w1.astype(jnp.bfloat16).astype(jnp.float32)

    params = {
        "w1": w1,
        "b1": jnp.float32(0.05),
        "w2": jnp.float32(1.3),
        "b2": jnp.float32(-0.02),
        "bn1": (
            1.0 + 0.1 * jax.random.normal(keys[2], (L,), jnp.float32),   # gamma
            0.05 * jax.random.normal(keys[3], (L,), jnp.float32),        # beta
            0.1 * jax.random.normal(keys[4], (L,), jnp.float32),         # mean
            1.0 + 0.2 * jax.random.uniform(keys[5], (L,), jnp.float32),  # var
        ),
        "bn2": (
            1.0 + 0.1 * jax.random.normal(keys[6], (L,), jnp.float32),
            0.05 * jax.random.normal(keys[7], (L,), jnp.float32),
            0.1 * jax.random.normal(keys[8], (L,), jnp.float32),
            1.0 + 0.2 * jax.random.uniform(keys[9], (L,), jnp.float32),
        ),
    }

    ref = jax.block_until_ready(gfem_reference(x, params))

    # f32 input path: default block_b -> 2 grid steps of 8 batch rows.
    out_f32 = jax.block_until_ready(gfem_forward(x, params))
    assert out_f32.shape == (B, 1, L), out_f32.shape
    np.testing.assert_allclose(np.asarray(out_f32), np.asarray(ref),
                               rtol=1e-4, atol=1e-4)

    # bf16 input path (halves HBM read bytes; compute stays f32 in-kernel).
    out_bf16 = jax.block_until_ready(
        gfem_forward(x, params, input_dtype=jnp.bfloat16))
    np.testing.assert_allclose(np.asarray(out_bf16), np.asarray(ref),
                               rtol=1e-4, atol=1e-4)

    # Tiny odd batch: single grid step, blocks equal to the full array dims.
    x3 = x[:3]
    ref3 = jax.block_until_ready(gfem_reference(x3, params))
    out3 = jax.block_until_ready(gfem_forward(x3, params))
    np.testing.assert_allclose(np.asarray(out3), np.asarray(ref3),
                               rtol=1e-4, atol=1e-4)

    print("KERNEL_OK")
</pallas_src>

<mosaic_0001>
module attributes {stable_mosaic.version = 11 : i64} {
  func.func @gfem_kernel(%arg0: i32, %arg1: memref<8x8x32xf32, #tpu.memory_space<vmem>>, %arg2: memref<3x8xf32, #tpu.memory_space<vmem>>, %arg3: memref<6x32xf32, #tpu.memory_space<vmem>>, %arg4: memref<8x32xf32, #tpu.memory_space<vmem>>) attributes {dimension_semantics = [#tpu.dimension_semantics<parallel>], iteration_bounds = array<i64: 2>, scalar_prefetch = 0 : i64, scratch_operands = 0 : i64, tpu.core_type = #tpu.core_type<tc>, window_params = [{transform_indices = @transform_0, window_bounds = array<i64: 8, 8, 32>}, {pipeline_mode = #tpu.pipeline_mode<synchronous>, transform_indices = @transform_1, window_bounds = array<i64: 3, 8>}, {pipeline_mode = #tpu.pipeline_mode<synchronous>, transform_indices = @transform_2, window_bounds = array<i64: 6, 32>}, {transform_indices = @transform_3, window_bounds = array<i64: 8, 32>}]} {
    %c0 = arith.constant 0 : index
    %c0_0 = arith.constant 0 : index
    %c0_1 = arith.constant 0 : index
    %0 = vector.load %arg1[%c0, %c0_0, %c0_1] : memref<8x8x32xf32, #tpu.memory_space<vmem>>, vector<8x8x32xf32>
    %c0_2 = arith.constant 0 : index
    %c0_3 = arith.constant 0 : index
    %1 = vector.load %arg2[%c0_2, %c0_3] : memref<3x8xf32, #tpu.memory_space<vmem>>, vector<3x8xf32>
    %2 = vector.shape_cast %1 : vector<3x8xf32> to vector<1x3x8xf32>
    %3 = vector.broadcast %2 : vector<1x3x8xf32> to vector<8x3x8xf32>
    %cst = arith.constant dense<0.000000e+00> : vector<8x3x32xf32>
    %4 = tpu.matmul %3, %0, %cst {dimension_numbers = #tpu.dot_dimension_numbers<[2], [1], [1], [2], [0, 0, 0, 1, 1, 2], [0], [0]>} : vector<8x3x8xf32>, vector<8x8x32xf32>, vector<8x3x32xf32> -> vector<8x3x32xf32>
    %5 = vector.extract_strided_slice %4 {offsets = [0, 0, 0], sizes = [8, 1, 32], strides = [1, 1, 1]} : vector<8x3x32xf32> to vector<8x1x32xf32>
    %cst_4 = arith.constant dense<0.000000e+00> : vector<8x32xf32>
    %6 = vector.multi_reduction <add>, %5, %cst_4 [1] : vector<8x1x32xf32> to vector<8x32xf32>
    %7 = vector.extract_strided_slice %4 {offsets = [0, 1, 0], sizes = [8, 1, 32], strides = [1, 1, 1]} : vector<8x3x32xf32> to vector<8x1x32xf32>
    %cst_5 = arith.constant dense<0.000000e+00> : vector<8x32xf32>
    %8 = vector.multi_reduction <add>, %7, %cst_5 [1] : vector<8x1x32xf32> to vector<8x32xf32>
    %9 = vector.extract_strided_slice %4 {offsets = [0, 2, 0], sizes = [8, 1, 32], strides = [1, 1, 1]} : vector<8x3x32xf32> to vector<8x1x32xf32>
    %cst_6 = arith.constant dense<0.000000e+00> : vector<8x32xf32>
    %10 = vector.multi_reduction <add>, %9, %cst_6 [1] : vector<8x1x32xf32> to vector<8x32xf32>
    %c0_7 = arith.constant 0 : index
    %c0_8 = arith.constant 0 : index
    %11 = vector.load %arg3[%c0_7, %c0_8] : memref<6x32xf32, #tpu.memory_space<vmem>>, vector<1x32xf32>
    %c1 = arith.constant 1 : index
    %c0_9 = arith.constant 0 : index
    %12 = vector.load %arg3[%c1, %c0_9] : memref<6x32xf32, #tpu.memory_space<vmem>>, vector<1x32xf32>
    %c2 = arith.constant 2 : index
    %c0_10 = arith.constant 0 : index
    %13 = vector.load %arg3[%c2, %c0_10] : memref<6x32xf32, #tpu.memory_space<vmem>>, vector<1x32xf32>
    %c3 = arith.constant 3 : index
    %c0_11 = arith.constant 0 : index
    %14 = vector.load %arg3[%c3, %c0_11] : memref<6x32xf32, #tpu.memory_space<vmem>>, vector<1x32xf32>
    %c4 = arith.constant 4 : index
    %c0_12 = arith.constant 0 : index
    %15 = vector.load %arg3[%c4, %c0_12] : memref<6x32xf32, #tpu.memory_space<vmem>>, vector<1x32xf32>
    %c5 = arith.constant 5 : index
    %c0_13 = arith.constant 0 : index
    %16 = vector.load %arg3[%c5, %c0_13] : memref<6x32xf32, #tpu.memory_space<vmem>>, vector<1x32xf32>
    %c1_i32 = arith.constant 1 : i32
    %17 = tpu.dynamic_rotate %6 by %c1_i32 dim 1 : vector<8x32xf32>, i32 -> vector<8x32xf32>
    %18 = vector.broadcast %15 : vector<1x32xf32> to vector<8x32xf32>
    %19 = arith.mulf %18, %17 : vector<8x32xf32>
    %20 = arith.addf %8, %19 : vector<8x32xf32>
    %c31_i32 = arith.constant 31 : i32
    %21 = tpu.dynamic_rotate %10 by %c31_i32 dim 1 : vector<8x32xf32>, i32 -> vector<8x32xf32>
    %22 = vector.broadcast %16 : vector<1x32xf32> to vector<8x32xf32>
    %23 = arith.mulf %22, %21 : vector<8x32xf32>
    %24 = arith.addf %20, %23 : vector<8x32xf32>
    %25 = vector.broadcast %11 : vector<1x32xf32> to vector<8x32xf32>
    %26 = arith.mulf %25, %24 : vector<8x32xf32>
    %27 = vector.broadcast %12 : vector<1x32xf32> to vector<8x32xf32>
    %28 = arith.addf %26, %27 : vector<8x32xf32>
    %cst_14 = arith.constant 0.000000e+00 : f32
    %29 = vector.broadcast %cst_14 : f32 to vector<8x32xf32>
    %30 = arith.maximumf %28, %29 : vector<8x32xf32>
    %31 = vector.broadcast %13 : vector<1x32xf32> to vector<8x32xf32>
    %32 = arith.mulf %31, %30 : vector<8x32xf32>
    %33 = vector.broadcast %14 : vector<1x32xf32> to vector<8x32xf32>
    %34 = arith.addf %32, %33 : vector<8x32xf32>
    %cst_15 = arith.constant 0.000000e+00 : f32
    %35 = vector.broadcast %cst_15 : f32 to vector<8x32xf32>
    %36 = arith.maximumf %34, %35 : vector<8x32xf32>
    %c0_16 = arith.constant 0 : index
    %c0_17 = arith.constant 0 : index
    %37 = vector.load %arg4[%c0_16, %c0_17] : memref<8x32xf32, #tpu.memory_space<vmem>>, vector<8x32xf32>
    tpu.vector_store %arg4[%c0_16, %c0_17], %36 {strides = array<i32>} : memref<8x32xf32, #tpu.memory_space<vmem>>, vector<8x32xf32>,
    return
  }
  func.func @transform_0(%arg0: i32) -> (i32, i32, i32) {
    %c0_i32 = arith.constant 0 : i32
    %c0_i32_0 = arith.constant 0 : i32
    %c0_i32_1 = arith.constant 0 : i32
    return %arg0, %c0_i32, %c0_i32_0 : i32, i32, i32
  }
  func.func @transform_1(%arg0: i32) -> (i32, i32) {
    %c0_i32 = arith.constant 0 : i32
    %c0_i32_0 = arith.constant 0 : i32
    %c0_i32_1 = arith.constant 0 : i32
    return %c0_i32, %c0_i32_0 : i32, i32
  }
  func.func @transform_2(%arg0: i32) -> (i32, i32) {
    %c0_i32 = arith.constant 0 : i32
    %c0_i32_0 = arith.constant 0 : i32
    %c0_i32_1 = arith.constant 0 : i32
    return %c0_i32, %c0_i32_0 : i32, i32
  }
  func.func @transform_3(%arg0: i32) -> (i32, i32) {
    %c0_i32 = arith.constant 0 : i32
    %c0_i32_0 = arith.constant 0 : i32
    return %arg0, %c0_i32 : i32, i32
  }
}

</mosaic_0001>

<llo_original>
// kernel: tpu_custom_call.1
$region0: #{tpu_custom_call.1}
  #allocation0 [shape = 'u32[]', space=smem, size = 0x4, offset = 0x4, fixed_abs, tag = 'smem constant byte address 0x4 - core index']
  #allocation1 [shape = 'u32[144,128]{1,0:T(1,128)}', space=vmem, size = 0x12000, scoped, tag = 'internal scratch']
  %s0 = inlined_call_operand.hbm [shape: f32[16,8,32], index: 0, kind: input, shape index: {}]
  %s1 = inlined_call_operand.hbm [shape: f32[3,8], index: 1, kind: input, shape index: {}]
  %s2 = inlined_call_operand.hbm [shape: f32[6,32], index: 2, kind: input, shape index: {}]
  %s3 = inlined_call_operand.hbm [shape: f32[16,32], index: 3, kind: output, shape index: {}]
  %s4 = sld [smem:[#allocation0]]
  $region57: #{tpu_custom_call.1} parent=0
    _
  %s6 = ssub.s32 1, %s4
  %s7 = scalar_select 0, %s6, %s4
  $region1: #{tpu_custom_call.1} parent=0
    #allocation2 [shape = 'u8[65536]{0}', space=vmem, size = 0x10000, scoped, tag = 'input window, operand 0']
    #allocation3 [shape = 's32[2]{0}', space=sflag, size = 0x8, scoped, tag = 'scoped memory for tpu_custom_call.1']
    #allocation4 [shape = 's32[2]{0}', space=sflag, size = 0x8, scoped, tag = 'scoped memory for tpu_custom_call.1']
    #allocation5 [shape = 'u8[2048]{0}', space=vmem, size = 0x800, scoped, tag = 'input window, operand 1, single buffered']
    #allocation6 [shape = 's32[1]{0}', space=sflag, size = 0x4, scoped, tag = 'scoped memory for tpu_custom_call.1']
    #allocation7 [shape = 'u8[4096]{0}', space=vmem, size = 0x1000, scoped, tag = 'input window, operand 2, single buffered']
    #allocation8 [shape = 'u8[8192]{0}', space=vmem, size = 0x2000, scoped, tag = 'output window, operand 0']
    %8 = vsyncpa [#allocation3], 0
    %s9 = scalar_lea.sflag [#allocation3], 1
    %10 = vsyncpa %s9, 0
    %11 = vsyncpa [#allocation6], 0
    %12 = vsyncpa [#allocation4], 0
    %s13 = scalar_lea.sflag [#allocation4], 1
    %14 = vsyncpa %s13, 0
    loop: start=0, step=1, limit=4
    $region2: #{tpu_custom_call.1} parent=1 // loop_pre_header
      _
    $region3: #{tpu_custom_call.1} parent=1 // loop_header
      %s16 = sphi 0, %s20
      %p17 = scmp.ge.s32.totalorder %s16, 4
      %s26 = sphi 0, %s28
      %s29 = sphi 0, %s26
      %s30 = sphi 0, %s29
      %s46 = sphi 0, %s30
      %s50 = sphi 0, %s50
      %s52 = sphi 0, %s50
      %s53 = sphi 0, %s52
      %s67 = sphi 0, %s53
      %s71 = sphi 0, %s71
      %s73 = sphi 0, %s71
      %s74 = sphi 0, %s73
      %s88 = sphi 0, %s74
      %s94 = sphi 0, %s96
      %s97 = sphi 0, %s94
      %s98 = sphi 0, %s97
      %s114 = sphi 0, %s98
    $region4: #{tpu_custom_call.1} parent=1 // loop_header_branch
      %19 = sbr.rel (%p17) target = $region8
    $region5: #{tpu_custom_call.1} parent=1 // loop_body
      %s21 = ssub.s32 %s16, 1
      %s22 = ssub.s32 %s16, 2
      %s23 = sadd.s32 %s16, 1
      %s24 = ssub.s32 %s16, %s23
      %p25 = scmp.eq.s32.totalorder %s24, 0
      %s27 = sadd.s32 %s26, 1
      %s28 = scalar_select %p25, %s26, %s27
      %p31 = pneg %p25
      %p32 = scmp.eq.s32.totalorder %s16, 1
      %p33 = por %p31, %p32
      %p34 = scmp.ne.s32.totalorder %s26, %s29
      %p35 = scmp.eq.s32.totalorder %s16, 0
      %p36 = por %p34, %p35
      %p37 = scmp.ne.s32.totalorder %s26, %s29
      %p38 = scmp.eq.s32.totalorder %s21, 1
      %p39 = por %p37, %p38
      %p40 = scmp.ne.s32.totalorder %s29, %s30
      %p41 = scmp.eq.s32.totalorder %s21, 0
      %p42 = por %p40, %p41
      %p43 = scmp.ne.s32.totalorder %s29, %s30
      %p44 = scmp.eq.s32.totalorder %s22, 1
      %p45 = por %p43, %p44
      %p47 = scmp.ne.s32.totalorder %s30, %s46
      %p48 = scmp.eq.s32.totalorder %s22, 0
      %p49 = por %p47, %p48
      %s51 = sadd.s32 %s50, 1
      %p54 = scmp.eq.s32.totalorder %s16, 1
      %p55 = scmp.ne.s32.totalorder %s50, %s52
      %p56 = scmp.eq.s32.totalorder %s16, 0
      %p57 = por %p55, %p56
      %p58 = scmp.ne.s32.totalorder %s50, %s52
      %p59 = scmp.eq.s32.totalorder %s21, 1
      %p60 = por %p58, %p59
      %p61 = scmp.ne.s32.totalorder %s52, %s53
      %p62 = scmp.eq.s32.totalorder %s21, 0
      %p63 = por %p61, %p62
      %p64 = scmp.ne.s32.totalorder %s52, %s53
      %p65 = scmp.eq.s32.totalorder %s22, 1
      %p66 = por %p64, %p65
      %p68 = scmp.ne.s32.totalorder %s53, %s67
      %p69 = scmp.eq.s32.totalorder %s22, 0
      %p70 = por %p68, %p69
      %s72 = sadd.s32 %s71, 1
      %p75 = scmp.eq.s32.totalorder %s16, 1
      %p76 = scmp.ne.s32.totalorder %s71, %s73
      %p77 = scmp.eq.s32.totalorder %s16, 0
      %p78 = por %p76, %p77
      %p79 = scmp.ne.s32.totalorder %s71, %s73
      %p80 = scmp.eq.s32.totalorder %s21, 1
      %p81 = por %p79, %p80
      %p82 = scmp.ne.s32.totalorder %s73, %s74
      %p83 = scmp.eq.s32.totalorder %s21, 0
      %p84 = por %p82, %p83
      %p85 = scmp.ne.s32.totalorder %s73, %s74
      %p86 = scmp.eq.s32.totalorder %s22, 1
      %p87 = por %p85, %p86
      %p89 = scmp.ne.s32.totalorder %s74, %s88
      %p90 = scmp.eq.s32.totalorder %s22, 0
      %p91 = por %p89, %p90
      %s92 = ssub.s32 %s16, %s23
      %p93 = scmp.eq.s32.totalorder %s92, 0
      %s95 = sadd.s32 %s94, 1
      %s96 = scalar_select %p93, %s94, %s95
      %p99 = pneg %p93
      %p100 = scmp.eq.s32.totalorder %s16, 1
      %p101 = por %p99, %p100
      %p102 = scmp.ne.s32.totalorder %s94, %s97
      %p103 = scmp.eq.s32.totalorder %s16, 0
      %p104 = por %p102, %p103
      %p105 = scmp.ne.s32.totalorder %s94, %s97
      %p106 = scmp.eq.s32.totalorder %s21, 1
      %p107 = por %p105, %p106
      %p108 = scmp.ne.s32.totalorder %s97, %s98
      %p109 = scmp.eq.s32.totalorder %s21, 0
      %p110 = por %p108, %p109
      %p111 = scmp.ne.s32.totalorder %s97, %s98
      %p112 = scmp.eq.s32.totalorder %s22, 1
      %p113 = por %p111, %p112
      %p115 = scmp.ne.s32.totalorder %s98, %s114
      %p116 = scmp.eq.s32.totalorder %s22, 0
      %p117 = por %p115, %p116
      %p118 = scmp.le.s32.totalorder 1, %s16
      %p119 = scmp.lt.s32.totalorder %s16, 3
      %p120 = pnand %p118, %p119
      %p121 = pneg %p120
      // Predicated region
      $region9: #{tpu_custom_call.1} parent=5 // pred_check
        _
      $region10: #{tpu_custom_call.1} parent=5 // pred_check_branch
        %123 = sbr.rel (%p120) target = $region12
      $region11: #{tpu_custom_call.1} parent=5 // pred_region
        %s124 = ssub.s32 %s16, 1
        // Predicated region
        $region13: #{tpu_custom_call.1} parent=11 // pred_check
          %p125 = pneg %p63
        $region14: #{tpu_custom_call.1} parent=11 // pred_check_branch
          %127 = sbr.rel (%p125) target = $region16
        $region15: #{tpu_custom_call.1} parent=11 // pred_region
          %s129 = ssub.s32 64, 64
          %130 = vsyncadd [#allocation6], %s129
          %s132 = sshll.u32 [#allocation5], 4
          %s133 = int_to_ptr.vmem [resolvable:$true] %s132
          %135 = dma.hbm_to_vmem [thread:$0]  %s1, 64, %s133, [#allocation6]
        $region16: #{tpu_custom_call.1} parent=11 // pred_fallthru
          _
        // Predicated region
        $region17: #{tpu_custom_call.1} parent=11 // pred_check
          %p136 = pneg %p84
        $region18: #{tpu_custom_call.1} parent=11 // pred_check_branch
          %138 = sbr.rel (%p136) target = $region20
        $region19: #{tpu_custom_call.1} parent=11 // pred_region
          %s140 = ssub.s32 128, 128
          %141 = vsyncadd [#allocation6], %s140
          %s143 = sshll.u32 [#allocation7], 4
          %s144 = int_to_ptr.vmem [resolvable:$true] %s143
          %146 = dma.hbm_to_vmem [thread:$0]  %s2, 128, %s144, [#allocation6]
        $region20: #{tpu_custom_call.1} parent=11 // pred_fallthru
          _
      $region12: #{tpu_custom_call.1} parent=5 // pred_fallthru
        _
      %p147 = scmp.lt.s32.totalorder %s16, 2
      // Predicated region
      $region21: #{tpu_custom_call.1} parent=5 // pred_check
        %p148 = pneg %p147
      $region22: #{tpu_custom_call.1} parent=5 // pred_check_branch
        %150 = sbr.rel (%p148) target = $region24
      $region23: #{tpu_custom_call.1} parent=5 // pred_region
        // Predicated region
        $region25: #{tpu_custom_call.1} parent=23 // pred_check
          %p151 = pneg %p36
        $region26: #{tpu_custom_call.1} parent=23 // pred_check_branch
          %153 = sbr.rel (%p151) target = $region28
        $region27: #{tpu_custom_call.1} parent=23 // pred_region
          %s154 = sand.u32 %s26, 1
          %s155 = scalar_lea.sflag [#allocation3], %s154
          %s156 = sand.u32 %s26, 1
          %s157 = smul.addr %s156, 64
          %s158 = scalar_lea.vmem [#allocation2], %s157
          %s159 = smul.u32 8, %s16
          %s161 = ssub.s32 1024, 1024
          %162 = vsyncadd %s155, %s161
          %s163 = smul.addr %s159, 128
          %s164 = scalar_lea.hbm %s0, %s163
          %s165 = sshll.u32 %s158, 4
          %s166 = int_to_ptr.vmem [resolvable:$true] %s165
          %171 = dma.hbm_to_vmem [thread:$0]  %s164, 1024, %s166, %s155, 128, 128, 8
        $region28: #{tpu_custom_call.1} parent=23 // pred_fallthru
          _
      $region24: #{tpu_custom_call.1} parent=5 // pred_fallthru
        _
      %p172 = scmp.le.s32.totalorder 1, %s16
      %p173 = scmp.lt.s32.totalorder %s16, 3
      %p174 = pnand %p172, %p173
      %p175 = pneg %p174
      // Predicated region
      $region29: #{tpu_custom_call.1} parent=5 // pred_check
        _
      $region30: #{tpu_custom_call.1} parent=5 // pred_check_branch
        %177 = sbr.rel (%p174) target = $region32
      $region31: #{tpu_custom_call.1} parent=5 // pred_region
        %s178 = ssub.s32 %s16, 1
        %s179 = sand.u32 %s29, 1
        %s180 = scalar_lea.sflag [#allocation3], %s179
        %s181 = sand.u32 %s29, 1
        %s182 = smul.addr %s181, 64
        %s183 = scalar_lea.vmem [#allocation2], %s182
        // Predicated region
        $region33: #{tpu_custom_call.1} parent=31 // pred_check
          %p184 = pneg %p42
        $region34: #{tpu_custom_call.1} parent=31 // pred_check_branch
          %186 = sbr.rel (%p184) target = $region36
        $region35: #{tpu_custom_call.1} parent=31 // pred_region
          %187 = dma.done %s180, 1024
        $region36: #{tpu_custom_call.1} parent=31 // pred_fallthru
          _
        // Predicated region
        $region37: #{tpu_custom_call.1} parent=31 // pred_check
          %p188 = pneg %p63
        $region38: #{tpu_custom_call.1} parent=31 // pred_check_branch
          %190 = sbr.rel (%p188) target = $region40
        $region39: #{tpu_custom_call.1} parent=31 // pred_region
          %191 = dma.done [#allocation6], 64
        $region40: #{tpu_custom_call.1} parent=31 // pred_fallthru
          _
        // Predicated region
        $region41: #{tpu_custom_call.1} parent=31 // pred_check
          %p192 = pneg %p84
        $region42: #{tpu_custom_call.1} parent=31 // pred_check_branch
          %194 = sbr.rel (%p192) target = $region44
        $region43: #{tpu_custom_call.1} parent=31 // pred_region
          %195 = dma.done [#allocation6], 128
        $region44: #{tpu_custom_call.1} parent=31 // pred_fallthru
          _
        %s196 = sand.u32 %s29, 1
        %s197 = scalar_lea.sflag [#allocation3], %s196
        %s198 = sand.u32 %s29, 1
        %s199 = smul.addr %s198, 64
        %s200 = scalar_lea.vmem [#allocation2], %s199
        %p201 = pneg %p42
        %p202 = pneg %p39
        %p203 = pneg %p63
        %p204 = pneg %p60
        %p205 = pneg %p84
        %p206 = pneg %p81
        %p207 = pneg %p110
        %p208 = pneg %p107
        %s209 = sand.u32 %s97, 1
        %s210 = scalar_lea.sflag [#allocation4], %s209
        %s211 = sand.u32 %s97, 1
        %s212 = smul.addr %s211, 8
        %s213 = scalar_lea.vmem [#allocation8], %s212
        %s214 = smul.u32 8, %s21
        %v215 = vld [vmem:[%s183] sm:$0xff]
        %v216 = vld [vmem:[%s183 + $0x8] sm:$0xff]
        %v217 = vld [vmem:[%s183 + $0x10] sm:$0xff]
        %v218 = vld [vmem:[%s183 + $0x18] sm:$0xff]
        %v219 = vld [vmem:[%s183 + $0x20] sm:$0xff]
        %v220 = vld [vmem:[%s183 + $0x28] sm:$0xff]
        %v221 = vld [vmem:[%s183 + $0x30] sm:$0xff]
        %v222 = vld [vmem:[%s183 + $0x38] sm:$0xff]
        %v223 = vld [vmem:[#allocation5] sm:$0x7]
        %vm224 = vcmask 64512
        %v226 = vsel %vm224, %v223, 0
        %228 = vmatprep.subr.mxu0 0.0
        %229 = vmatpush1.msra.mxu0 %v215
        %230 = vmatprep.subr.mxu0 0.0
        %231 = vmatpush1.msra.mxu0 0.0
        %232 = vmatprep.subr.mxu0 0.0
        %233 = vmatpush1.msra.mxu0 0.0
        %234 = vmatprep.subr.mxu0 0.0
        %235 = vmatpush1.msra.mxu0 0.0
        %236 = vmatprep.subr.mxu0 0.0
        %237 = vmatpush1.msra.mxu0 0.0
        %238 = vmatprep.subr.mxu0 0.0
        %239 = vmatpush1.msra.mxu0 0.0
        %240 = vmatprep.subr.mxu0 0.0
        %241 = vmatpush1.msra.mxu0 0.0
        %242 = vmatprep.subr.mxu0 0.0
        %243 = vmatpush1.msra.mxu0 0.0
        %244 = vmatprep.subr.mxu0 0.0
        %245 = vmatpush1.msra.mxu0 0.0
        %246 = vmatprep.subr.mxu0 0.0
        %247 = vmatpush1.msra.mxu0 0.0
        %248 = vmatprep.subr.mxu0 0.0
        %249 = vmatpush1.msra.mxu0 0.0
        %250 = vmatprep.subr.mxu0 0.0
        %251 = vmatpush1.msra.mxu0 0.0
        %252 = vmatprep.subr.mxu0 0.0
        %253 = vmatpush1.msra.mxu0 0.0
        %254 = vmatprep.subr.mxu0 0.0
        %255 = vmatpush1.msra.mxu0 0.0
        %256 = vmatprep.subr.mxu0 0.0
        %257 = vmatpush1.msra.mxu0 0.0
        %258 = vmatprep.subr.mxu0 0.0
        %259 = vmatpush1.msra.mxu0 0.0
        %260 = vmatprep.subr.mxu0 0.0
        %261 = vmatpush1.msra.mxu0 0.0
        %262 = vmatprep.subr.mxu0 0.0
        %263 = vmatpush1.msra.mxu0 0.0
        %264 = vmatprep.subr.mxu0 0.0
        %265 = vmatpush1.msra.mxu0 0.0
        %266 = vmatprep.subr.mxu0 0.0
        %267 = vmatpush1.msra.mxu0 0.0
        %268 = vmatprep.subr.mxu0 0.0
        %269 = vmatpush1.msra.mxu0 0.0
        %270 = vmatprep.subr.mxu0 0.0
        %271 = vmatpush1.msra.mxu0 0.0
        %272 = vmatprep.subr.mxu0 0.0
        %273 = vmatpush1.msra.mxu0 0.0
        %274 = vmatprep.subr.mxu0 0.0
        %275 = vmatpush1.msra.mxu0 0.0
        %276 = vmatprep.subr.mxu0 0.0
        %277 = vmatpush1.msra.mxu0 0.0
        %278 = vmatprep.subr.mxu0 0.0
        %279 = vmatpush1.msra.mxu0 0.0
        %280 = vmatprep.subr.mxu0 0.0
        %281 = vmatpush1.msra.mxu0 0.0
        %282 = vmatprep.subr.mxu0 0.0
        %283 = vmatpush1.msra.mxu0 0.0
        %284 = vmatprep.subr.mxu0 0.0
        %285 = vmatpush1.msra.mxu0 0.0
        %286 = vmatprep.subr.mxu0 0.0
        %287 = vmatpush1.msra.mxu0 0.0
        %288 = vmatprep.subr.mxu0 0.0
        %289 = vmatpush1.msra.mxu0 0.0
        %290 = vmatprep.subr.mxu0 0.0
        %291 = vmatpush1.msra.mxu0 0.0
        %292 = vmatprep.mubr.f32.mxu0 0.0
        %293 = vmatmul.mubr.f32.gmra.mrb[0].mxu0 %v226
        %v294 = vpop.f32.mrb[0].mxu0
        %v295 = vadd.f32 0.0, %v294
        %v296 = vpop.f32.mrb[0].mxu0
        %297 = vdwg.mxu0
        %298 = vmatprep.subr.mxu0 0.0
        %299 = vmatpush1.msra.mxu0 %v216
        %300 = vmatprep.subr.mxu0 0.0
        %301 = vmatpush1.msra.mxu0 0.0
        %302 = vmatprep.subr.mxu0 0.0
        %303 = vmatpush1.msra.mxu0 0.0
        %304 = vmatprep.subr.mxu0 0.0
        %305 = vmatpush1.msra.mxu0 0.0
        %306 = vmatprep.subr.mxu0 0.0
        %307 = vmatpush1.msra.mxu0 0.0
        %308 = vmatprep.subr.mxu0 0.0
        %309 = vmatpush1.msra.mxu0 0.0
        %310 = vmatprep.subr.mxu0 0.0
        %311 = vmatpush1.msra.mxu0 0.0
        %312 = vmatprep.subr.mxu0 0.0
        %313 = vmatpush1.msra.mxu0 0.0
        %314 = vmatprep.subr.mxu0 0.0
        %315 = vmatpush1.msra.mxu0 0.0
        %316 = vmatprep.subr.mxu0 0.0
        %317 = vmatpush1.msra.mxu0 0.0
        %318 = vmatprep.subr.mxu0 0.0
        %319 = vmatpush1.msra.mxu0 0.0
        %320 = vmatprep.subr.mxu0 0.0
        %321 = vmatpush1.msra.mxu0 0.0
        %322 = vmatprep.subr.mxu0 0.0
        %323 = vmatpush1.msra.mxu0 0.0
        %324 = vmatprep.subr.mxu0 0.0
        %325 = vmatpush1.msra.mxu0 0.0
        %326 = vmatprep.subr.mxu0 0.0
        %327 = vmatpush1.msra.mxu0 0.0
        %328 = vmatprep.subr.mxu0 0.0
        %329 = vmatpush1.msra.mxu0 0.0
        %330 = vmatprep.subr.mxu0 0.0
        %331 = vmatpush1.msra.mxu0 0.0
        %332 = vmatprep.subr.mxu0 0.0
        %333 = vmatpush1.msra.mxu0 0.0
        %334 = vmatprep.subr.mxu0 0.0
        %335 = vmatpush1.msra.mxu0 0.0
        %336 = vmatprep.subr.mxu0 0.0
        %337 = vmatpush1.msra.mxu0 0.0
        %338 = vmatprep.subr.mxu0 0.0
        %339 = vmatpush1.msra.mxu0 0.0
        %340 = vmatprep.subr.mxu0 0.0
        %341 = vmatpush1.msra.mxu0 0.0
        %342 = vmatprep.subr.mxu0 0.0
        %343 = vmatpush1.msra.mxu0 0.0
        %344 = vmatprep.subr.mxu0 0.0
        %345 = vmatpush1.msra.mxu0 0.0
        %346 = vmatprep.subr.mxu0 0.0
        %347 = vmatpush1.msra.mxu0 0.0
        %348 = vmatprep.subr.mxu0 0.0
        %349 = vmatpush1.msra.mxu0 0.0
        %350 = vmatprep.subr.mxu0 0.0
        %351 = vmatpush1.msra.mxu0 0.0
        %352 = vmatprep.subr.mxu0 0.0
        %353 = vmatpush1.msra.mxu0 0.0
        %354 = vmatprep.subr.mxu0 0.0
        %355 = vmatpush1.msra.mxu0 0.0
        %356 = vmatprep.subr.mxu0 0.0
        %357 = vmatpush1.msra.mxu0 0.0
        %358 = vmatprep.subr.mxu0 0.0
        %359 = vmatpush1.msra.mxu0 0.0
        %360 = vmatprep.subr.mxu0 0.0
        %361 = vmatpush1.msra.mxu0 0.0
        %362 = vmatprep.mubr.f32.mxu0 0.0
        %363 = vmatmul.mubr.f32.gmra.mrb[0].mxu0 %v226
        %v364 = vpop.f32.mrb[0].mxu0
        %v365 = vadd.f32 0.0, %v364
        %v366 = vpop.f32.mrb[0].mxu0
        %367 = vdwg.mxu0
        %368 = vmatprep.subr.mxu0 0.0
        %369 = vmatpush1.msra.mxu0 %v217
        %370 = vmatprep.subr.mxu0 0.0
        %371 = vmatpush1.msra.mxu0 0.0
        %372 = vmatprep.subr.mxu0 0.0
        %373 = vmatpush1.msra.mxu0 0.0
        %374 = vmatprep.subr.mxu0 0.0
        %375 = vmatpush1.msra.mxu0 0.0
        %376 = vmatprep.subr.mxu0 0.0
        %377 = vmatpush1.msra.mxu0 0.0
        %378 = vmatprep.subr.mxu0 0.0
        %379 = vmatpush1.msra.mxu0 0.0
        %380 = vmatprep.subr.mxu0 0.0
        %381 = vmatpush1.msra.mxu0 0.0
        %382 = vmatprep.subr.mxu0 0.0
        %383 = vmatpush1.msra.mxu0 0.0
        %384 = vmatprep.subr.mxu0 0.0
        %385 = vmatpush1.msra.mxu0 0.0
        %386 = vmatprep.subr.mxu0 0.0
        %387 = vmatpush1.msra.mxu0 0.0
        %388 = vmatprep.subr.mxu0 0.0
        %389 = vmatpush1.msra.mxu0 0.0
        %390 = vmatprep.subr.mxu0 0.0
        %391 = vmatpush1.msra.mxu0 0.0
        %392 = vmatprep.subr.mxu0 0.0
        %393 = vmatpush1.msra.mxu0 0.0
        %394 = vmatprep.subr.mxu0 0.0
        %395 = vmatpush1.msra.mxu0 0.0
        %396 = vmatprep.subr.mxu0 0.0
        %397 = vmatpush1.msra.mxu0 0.0
        %398 = vmatprep.subr.mxu0 0.0
        %399 = vmatpush1.msra.mxu0 0.0
        %400 = vmatprep.subr.mxu0 0.0
        %401 = vmatpush1.msra.mxu0 0.0
        %402 = vmatprep.subr.mxu0 0.0
        %403 = vmatpush1.msra.mxu0 0.0
        %404 = vmatprep.subr.mxu0 0.0
        %405 = vmatpush1.msra.mxu0 0.0
        %406 = vmatprep.subr.mxu0 0.0
        %407 = vmatpush1.msra.mxu0 0.0
        %408 = vmatprep.subr.mxu0 0.0
        %409 = vmatpush1.msra.mxu0 0.0
        %410 = vmatprep.subr.mxu0 0.0
        %411 = vmatpush1.msra.mxu0 0.0
        %412 = vmatprep.subr.mxu0 0.0
        %413 = vmatpush1.msra.mxu0 0.0
        %414 = vmatprep.subr.mxu0 0.0
        %415 = vmatpush1.msra.mxu0 0.0
        %416 = vmatprep.subr.mxu0 0.0
        %417 = vmatpush1.msra.mxu0 0.0
        %418 = vmatprep.subr.mxu0 0.0
        %419 = vmatpush1.msra.mxu0 0.0
        %420 = vmatprep.subr.mxu0 0.0
        %421 = vmatpush1.msra.mxu0 0.0
        %422 = vmatprep.subr.mxu0 0.0
        %423 = vmatpush1.msra.mxu0 0.0
        %424 = vmatprep.subr.mxu0 0.0
        %425 = vmatpush1.msra.mxu0 0.0
        %426 = vmatprep.subr.mxu0 0.0
        %427 = vmatpush1.msra.mxu0 0.0
        %428 = vmatprep.subr.mxu0 0.0
        %429 = vmatpush1.msra.mxu0 0.0
        %430 = vmatprep.subr.mxu0 0.0
        %431 = vmatpush1.msra.mxu0 0.0
        %432 = vmatprep.mubr.f32.mxu0 0.0
        %433 = vmatmul.mubr.f32.gmra.mrb[0].mxu0 %v226
        %v434 = vpop.f32.mrb[0].mxu0
        %v435 = vadd.f32 0.0, %v434
        %v436 = vpop.f32.mrb[0].mxu0
        %437 = vdwg.mxu0
        %438 = vmatprep.subr.mxu0 0.0
        %439 = vmatpush1.msra.mxu0 %v218
        %440 = vmatprep.subr.mxu0 0.0
        %441 = vmatpush1.msra.mxu0 0.0
        %442 = vmatprep.subr.mxu0 0.0
        %443 = vmatpush1.msra.mxu0 0.0
        %444 = vmatprep.subr.mxu0 0.0
        %445 = vmatpush1.msra.mxu0 0.0
        %446 = vmatprep.subr.mxu0 0.0
        %447 = vmatpush1.msra.mxu0 0.0
        %448 = vmatprep.subr.mxu0 0.0
        %449 = vmatpush1.msra.mxu0 0.0
        %450 = vmatprep.subr.mxu0 0.0
        %451 = vmatpush1.msra.mxu0 0.0
        %452 = vmatprep.subr.mxu0 0.0
        %453 = vmatpush1.msra.mxu0 0.0
        %454 = vmatprep.subr.mxu0 0.0
        %455 = vmatpush1.msra.mxu0 0.0
        %456 = vmatprep.subr.mxu0 0.0
        %457 = vmatpush1.msra.mxu0 0.0
        %458 = vmatprep.subr.mxu0 0.0
        %459 = vmatpush1.msra.mxu0 0.0
        %460 = vmatprep.subr.mxu0 0.0
        %461 = vmatpush1.msra.mxu0 0.0
        %462 = vmatprep.subr.mxu0 0.0
        %463 = vmatpush1.msra.mxu0 0.0
        %464 = vmatprep.subr.mxu0 0.0
        %465 = vmatpush1.msra.mxu0 0.0
        %466 = vmatprep.subr.mxu0 0.0
        %467 = vmatpush1.msra.mxu0 0.0
        %468 = vmatprep.subr.mxu0 0.0
        %469 = vmatpush1.msra.mxu0 0.0
        %470 = vmatprep.subr.mxu0 0.0
        %471 = vmatpush1.msra.mxu0 0.0
        %472 = vmatprep.subr.mxu0 0.0
        %473 = vmatpush1.msra.mxu0 0.0
        %474 = vmatprep.subr.mxu0 0.0
        %475 = vmatpush1.msra.mxu0 0.0
        %476 = vmatprep.subr.mxu0 0.0
        %477 = vmatpush1.msra.mxu0 0.0
        %478 = vmatprep.subr.mxu0 0.0
        %479 = vmatpush1.msra.mxu0 0.0
        %480 = vmatprep.subr.mxu0 0.0
        %481 = vmatpush1.msra.mxu0 0.0
        %482 = vmatprep.subr.mxu0 0.0
        %483 = vmatpush1.msra.mxu0 0.0
        %484 = vmatprep.subr.mxu0 0.0
        %485 = vmatpush1.msra.mxu0 0.0
        %486 = vmatprep.subr.mxu0 0.0
        %487 = vmatpush1.msra.mxu0 0.0
        %488 = vmatprep.subr.mxu0 0.0
        %489 = vmatpush1.msra.mxu0 0.0
        %490 = vmatprep.subr.mxu0 0.0
        %491 = vmatpush1.msra.mxu0 0.0
        %492 = vmatprep.subr.mxu0 0.0
        %493 = vmatpush1.msra.mxu0 0.0
        %494 = vmatprep.subr.mxu0 0.0
        %495 = vmatpush1.msra.mxu0 0.0
        %496 = vmatprep.subr.mxu0 0.0
        %497 = vmatpush1.msra.mxu0 0.0
        %498 = vmatprep.subr.mxu0 0.0
        %499 = vmatpush1.msra.mxu0 0.0
        %500 = vmatprep.subr.mxu0 0.0
        %501 = vmatpush1.msra.mxu0 0.0
        %502 = vmatprep.mubr.f32.mxu0 0.0
        %503 = vmatmul.mubr.f32.gmra.mrb[0].mxu0 %v226
        %v504 = vpop.f32.mrb[0].mxu0
        %v505 = vadd.f32 0.0, %v504
        %v506 = vpop.f32.mrb[0].mxu0
        %507 = vdwg.mxu0
        %508 = vmatprep.subr.mxu0 0.0
        %509 = vmatpush1.msra.mxu0 %v219
        %510 = vmatprep.subr.mxu0 0.0
        %511 = vmatpush1.msra.mxu0 0.0
        %512 = vmatprep.subr.mxu0 0.0
        %513 = vmatpush1.msra.mxu0 0.0
        %514 = vmatprep.subr.mxu0 0.0
        %515 = vmatpush1.msra.mxu0 0.0
        %516 = vmatprep.subr.mxu0 0.0
        %517 = vmatpush1.msra.mxu0 0.0
        %518 = vmatprep.subr.mxu0 0.0
        %519 = vmatpush1.msra.mxu0 0.0
        %520 = vmatprep.subr.mxu0 0.0
        %521 = vmatpush1.msra.mxu0 0.0
        %522 = vmatprep.subr.mxu0 0.0
        %523 = vmatpush1.msra.mxu0 0.0
        %524 = vmatprep.subr.mxu0 0.0
        %525 = vmatpush1.msra.mxu0 0.0
        %526 = vmatprep.subr.mxu0 0.0
        %527 = vmatpush1.msra.mxu0 0.0
        %528 = vmatprep.subr.mxu0 0.0
        %529 = vmatpush1.msra.mxu0 0.0
        %530 = vmatprep.subr.mxu0 0.0
        %531 = vmatpush1.msra.mxu0 0.0
        %532 = vmatprep.subr.mxu0 0.0
        %533 = vmatpush1.msra.mxu0 0.0
        %534 = vmatprep.subr.mxu0 0.0
        %535 = vmatpush1.msra.mxu0 0.0
        %536 = vmatprep.subr.mxu0 0.0
        %537 = vmatpush1.msra.mxu0 0.0
        %538 = vmatprep.subr.mxu0 0.0
        %539 = vmatpush1.msra.mxu0 0.0
        %540 = vmatprep.subr.mxu0 0.0
        %541 = vmatpush1.msra.mxu0 0.0
        %542 = vmatprep.subr.mxu0 0.0
        %543 = vmatpush1.msra.mxu0 0.0
        %544 = vmatprep.subr.mxu0 0.0
        %545 = vmatpush1.msra.mxu0 0.0
        %546 = vmatprep.subr.mxu0 0.0
        %547 = vmatpush1.msra.mxu0 0.0
        %548 = vmatprep.subr.mxu0 0.0
        %549 = vmatpush1.msra.mxu0 0.0
        %550 = vmatprep.subr.mxu0 0.0
        %551 = vmatpush1.msra.mxu0 0.0
        %552 = vmatprep.subr.mxu0 0.0
        %553 = vmatpush1.msra.mxu0 0.0
        %554 = vmatprep.subr.mxu0 0.0
        %555 = vmatpush1.msra.mxu0 0.0
        %556 = vmatprep.subr.mxu0 0.0
        %557 = vmatpush1.msra.mxu0 0.0
        %558 = vmatprep.subr.mxu0 0.0
        %559 = vmatpush1.msra.mxu0 0.0
        %560 = vmatprep.subr.mxu0 0.0
        %561 = vmatpush1.msra.mxu0 0.0
        %562 = vmatprep.subr.mxu0 0.0
        %563 = vmatpush1.msra.mxu0 0.0
        %564 = vmatprep.subr.mxu0 0.0
        %565 = vmatpush1.msra.mxu0 0.0
        %566 = vmatprep.subr.mxu0 0.0
        %567 = vmatpush1.msra.mxu0 0.0
        %568 = vmatprep.subr.mxu0 0.0
        %569 = vmatpush1.msra.mxu0 0.0
        %570 = vmatprep.subr.mxu0 0.0
        %571 = vmatpush1.msra.mxu0 0.0
        %572 = vmatprep.mubr.f32.mxu0 0.0
        %573 = vmatmul.mubr.f32.gmra.mrb[0].mxu0 %v226
        %v574 = vpop.f32.mrb[0].mxu0
        %v575 = vadd.f32 0.0, %v574
        %v576 = vpop.f32.mrb[0].mxu0
        %577 = vdwg.mxu0
        %578 = vmatprep.subr.mxu0 0.0
        %579 = vmatpush1.msra.mxu0 %v220
        %580 = vmatprep.subr.mxu0 0.0
        %581 = vmatpush1.msra.mxu0 0.0
        %582 = vmatprep.subr.mxu0 0.0
        %583 = vmatpush1.msra.mxu0 0.0
        %584 = vmatprep.subr.mxu0 0.0
        %585 = vmatpush1.msra.mxu0 0.0
        %586 = vmatprep.subr.mxu0 0.0
        %587 = vmatpush1.msra.mxu0 0.0
        %588 = vmatprep.subr.mxu0 0.0
        %589 = vmatpush1.msra.mxu0 0.0
        %590 = vmatprep.subr.mxu0 0.0
        %591 = vmatpush1.msra.mxu0 0.0
        %592 = vmatprep.subr.mxu0 0.0
        %593 = vmatpush1.msra.mxu0 0.0
        %594 = vmatprep.subr.mxu0 0.0
        %595 = vmatpush1.msra.mxu0 0.0
        %596 = vmatprep.subr.mxu0 0.0
        %597 = vmatpush1.msra.mxu0 0.0
        %598 = vmatprep.subr.mxu0 0.0
        %599 = vmatpush1.msra.mxu0 0.0
        %600 = vmatprep.subr.mxu0 0.0
        %601 = vmatpush1.msra.mxu0 0.0
        %602 = vmatprep.subr.mxu0 0.0
        %603 = vmatpush1.msra.mxu0 0.0
        %604 = vmatprep.subr.mxu0 0.0
        %605 = vmatpush1.msra.mxu0 0.0
        %606 = vmatprep.subr.mxu0 0.0
        %607 = vmatpush1.msra.mxu0 0.0
        %608 = vmatprep.subr.mxu0 0.0
        %609 = vmatpush1.msra.mxu0 0.0
        %610 = vmatprep.subr.mxu0 0.0
        %611 = vmatpush1.msra.mxu0 0.0
        %612 = vmatprep.subr.mxu0 0.0
        %613 = vmatpush1.msra.mxu0 0.0
        %614 = vmatprep.subr.mxu0 0.0
        %615 = vmatpush1.msra.mxu0 0.0
        %616 = vmatprep.subr.mxu0 0.0
        %617 = vmatpush1.msra.mxu0 0.0
        %618 = vmatprep.subr.mxu0 0.0
        %619 = vmatpush1.msra.mxu0 0.0
        %620 = vmatprep.subr.mxu0 0.0
        %621 = vmatpush1.msra.mxu0 0.0
        %622 = vmatprep.subr.mxu0 0.0
        %623 = vmatpush1.msra.mxu0 0.0
        %624 = vmatprep.subr.mxu0 0.0
        %625 = vmatpush1.msra.mxu0 0.0
        %626 = vmatprep.subr.mxu0 0.0
        %627 = vmatpush1.msra.mxu0 0.0
        %628 = vmatprep.subr.mxu0 0.0
        %629 = vmatpush1.msra.mxu0 0.0
        %630 = vmatprep.subr.mxu0 0.0
        %631 = vmatpush1.msra.mxu0 0.0
        %632 = vmatprep.subr.mxu0 0.0
        %633 = vmatpush1.msra.mxu0 0.0
        %634 = vmatprep.subr.mxu0 0.0
        %635 = vmatpush1.msra.mxu0 0.0
        %636 = vmatprep.subr.mxu0 0.0
        %637 = vmatpush1.msra.mxu0 0.0
        %638 = vmatprep.subr.mxu0 0.0
        %639 = vmatpush1.msra.mxu0 0.0
        %640 = vmatprep.subr.mxu0 0.0
        %641 = vmatpush1.msra.mxu0 0.0
        %642 = vmatprep.mubr.f32.mxu0 0.0
        %643 = vmatmul.mubr.f32.gmra.mrb[0].mxu0 %v226
        %v644 = vpop.f32.mrb[0].mxu0
        %v645 = vadd.f32 0.0, %v644
        %v646 = vpop.f32.mrb[0].mxu0
        %647 = vdwg.mxu0
        %648 = vmatprep.subr.mxu0 0.0
        %649 = vmatpush1.msra.mxu0 %v221
        %650 = vmatprep.subr.mxu0 0.0
        %651 = vmatpush1.msra.mxu0 0.0
        %652 = vmatprep.subr.mxu0 0.0
        %653 = vmatpush1.msra.mxu0 0.0
        %654 = vmatprep.subr.mxu0 0.0
        %655 = vmatpush1.msra.mxu0 0.0
        %656 = vmatprep.subr.mxu0 0.0
        %657 = vmatpush1.msra.mxu0 0.0
        %658 = vmatprep.subr.mxu0 0.0
        %659 = vmatpush1.msra.mxu0 0.0
        %660 = vmatprep.subr.mxu0 0.0
        %661 = vmatpush1.msra.mxu0 0.0
        %662 = vmatprep.subr.mxu0 0.0
        %663 = vmatpush1.msra.mxu0 0.0
        %664 = vmatprep.subr.mxu0 0.0
        %665 = vmatpush1.msra.mxu0 0.0
        %666 = vmatprep.subr.mxu0 0.0
        %667 = vmatpush1.msra.mxu0 0.0
        %668 = vmatprep.subr.mxu0 0.0
        %669 = vmatpush1.msra.mxu0 0.0
        %670 = vmatprep.subr.mxu0 0.0
        %671 = vmatpush1.msra.mxu0 0.0
        %672 = vmatprep.subr.mxu0 0.0
        %673 = vmatpush1.msra.mxu0 0.0
        %674 = vmatprep.subr.mxu0 0.0
        %675 = vmatpush1.msra.mxu0 0.0
        %676 = vmatprep.subr.mxu0 0.0
        %677 = vmatpush1.msra.mxu0 0.0
        %678 = vmatprep.subr.mxu0 0.0
        %679 = vmatpush1.msra.mxu0 0.0
        %680 = vmatprep.subr.mxu0 0.0
        %681 = vmatpush1.msra.mxu0 0.0
        %682 = vmatprep.subr.mxu0 0.0
        %683 = vmatpush1.msra.mxu0 0.0
        %684 = vmatprep.subr.mxu0 0.0
        %685 = vmatpush1.msra.mxu0 0.0
        %686 = vmatprep.subr.mxu0 0.0
        %687 = vmatpush1.msra.mxu0 0.0
        %688 = vmatprep.subr.mxu0 0.0
        %689 = vmatpush1.msra.mxu0 0.0
        %690 = vmatprep.subr.mxu0 0.0
        %691 = vmatpush1.msra.mxu0 0.0
        %692 = vmatprep.subr.mxu0 0.0
        %693 = vmatpush1.msra.mxu0 0.0
        %694 = vmatprep.subr.mxu0 0.0
        %695 = vmatpush1.msra.mxu0 0.0
        %696 = vmatprep.subr.mxu0 0.0
        %697 = vmatpush1.msra.mxu0 0.0
        %698 = vmatprep.subr.mxu0 0.0
        %699 = vmatpush1.msra.mxu0 0.0
        %700 = vmatprep.subr.mxu0 0.0
        %701 = vmatpush1.msra.mxu0 0.0
        %702 = vmatprep.subr.mxu0 0.0
        %703 = vmatpush1.msra.mxu0 0.0
        %704 = vmatprep.subr.mxu0 0.0
        %705 = vmatpush1.msra.mxu0 0.0
        %706 = vmatprep.subr.mxu0 0.0
        %707 = vmatpush1.msra.mxu0 0.0
        %708 = vmatprep.subr.mxu0 0.0
        %709 = vmatpush1.msra.mxu0 0.0
        %710 = vmatprep.subr.mxu0 0.0
        %711 = vmatpush1.msra.mxu0 0.0
        %712 = vmatprep.mubr.f32.mxu0 0.0
        %713 = vmatmul.mubr.f32.gmra.mrb[0].mxu0 %v226
        %v714 = vpop.f32.mrb[0].mxu0
        %v715 = vadd.f32 0.0, %v714
        %v716 = vpop.f32.mrb[0].mxu0
        %717 = vdwg.mxu0
        %718 = vmatprep.subr.mxu0 0.0
        %719 = vmatpush1.msra.mxu0 %v222
        %720 = vmatprep.subr.mxu0 0.0
        %721 = vmatpush1.msra.mxu0 0.0
        %722 = vmatprep.subr.mxu0 0.0
        %723 = vmatpush1.msra.mxu0 0.0
        %724 = vmatprep.subr.mxu0 0.0
        %725 = vmatpush1.msra.mxu0 0.0
        %726 = vmatprep.subr.mxu0 0.0
        %727 = vmatpush1.msra.mxu0 0.0
        %728 = vmatprep.subr.mxu0 0.0
        %729 = vmatpush1.msra.mxu0 0.0
        %730 = vmatprep.subr.mxu0 0.0
        %731 = vmatpush1.msra.mxu0 0.0
        %732 = vmatprep.subr.mxu0 0.0
        %733 = vmatpush1.msra.mxu0 0.0
        %734 = vmatprep.subr.mxu0 0.0
        %735 = vmatpush1.msra.mxu0 0.0
        %736 = vmatprep.subr.mxu0 0.0
        %737 = vmatpush1.msra.mxu0 0.0
        %738 = vmatprep.subr.mxu0 0.0
        %739 = vmatpush1.msra.mxu0 0.0
        %740 = vmatprep.subr.mxu0 0.0
        %741 = vmatpush1.msra.mxu0 0.0
        %742 = vmatprep.subr.mxu0 0.0
        %743 = vmatpush1.msra.mxu0 0.0
        %744 = vmatprep.subr.mxu0 0.0
        %745 = vmatpush1.msra.mxu0 0.0
        %746 = vmatprep.subr.mxu0 0.0
        %747 = vmatpush1.msra.mxu0 0.0
        %748 = vmatprep.subr.mxu0 0.0
        %749 = vmatpush1.msra.mxu0 0.0
        %750 = vmatprep.subr.mxu0 0.0
        %751 = vmatpush1.msra.mxu0 0.0
        %752 = vmatprep.subr.mxu0 0.0
        %753 = vmatpush1.msra.mxu0 0.0
        %754 = vmatprep.subr.mxu0 0.0
        %755 = vmatpush1.msra.mxu0 0.0
        %756 = vmatprep.subr.mxu0 0.0
        %757 = vmatpush1.msra.mxu0 0.0
        %758 = vmatprep.subr.mxu0 0.0
        %759 = vmatpush1.msra.mxu0 0.0
        %760 = vmatprep.subr.mxu0 0.0
        %761 = vmatpush1.msra.mxu0 0.0
        %762 = vmatprep.subr.mxu0 0.0
        %763 = vmatpush1.msra.mxu0 0.0
        %764 = vmatprep.subr.mxu0 0.0
        %765 = vmatpush1.msra.mxu0 0.0
        %766 = vmatprep.subr.mxu0 0.0
        %767 = vmatpush1.msra.mxu0 0.0
        %768 = vmatprep.subr.mxu0 0.0
        %769 = vmatpush1.msra.mxu0 0.0
        %770 = vmatprep.subr.mxu0 0.0
        %771 = vmatpush1.msra.mxu0 0.0
        %772 = vmatprep.subr.mxu0 0.0
        %773 = vmatpush1.msra.mxu0 0.0
        %774 = vmatprep.subr.mxu0 0.0
        %775 = vmatpush1.msra.mxu0 0.0
        %776 = vmatprep.subr.mxu0 0.0
        %777 = vmatpush1.msra.mxu0 0.0
        %778 = vmatprep.subr.mxu0 0.0
        %779 = vmatpush1.msra.mxu0 0.0
        %780 = vmatprep.subr.mxu0 0.0
        %781 = vmatpush1.msra.mxu0 0.0
        %782 = vmatprep.mubr.f32.mxu0 0.0
        %783 = vmatmul.mubr.f32.gmra.mrb[0].mxu0 %v226
        %v784 = vpop.f32.mrb[0].mxu0
        %v785 = vadd.f32 0.0, %v784
        %v786 = vpop.f32.mrb[0].mxu0
        %787 = vdwg.mxu0
        %v788 = vadd.f32 %v295, 0.0
        %v789 = vadd.f32 %v365, 0.0
        %v790 = vadd.f32 %v435, 0.0
        %v791 = vadd.f32 %v505, 0.0
        %v792 = vadd.f32 %v575, 0.0
        %v793 = vadd.f32 %v645, 0.0
        %v794 = vadd.f32 %v715, 0.0
        %v795 = vadd.f32 %v785, 0.0
        %v796 = vld [vmem:[#allocation7] sm:$0x1]
        %v797 = vld [vmem:[#allocation7 + $0x1] sm:$0x1]
        %v798 = vld [vmem:[#allocation7 + $0x2] sm:$0x1]
        %v799 = vld [vmem:[#allocation7 + $0x3] sm:$0x1]
        %v800 = vld [vmem:[#allocation7 + $0x4] sm:$0x1]
        %v801 = vld [vmem:[#allocation7 + $0x5] sm:$0x1]
        %v810 = vrot.slane %v789, 7
        %vm811 = vcmask 1041409
        %v812 = vsel %vm811, %v810, %v788
        %v813 = vrot.slane %v790, 6
        %vm814 = vcmask 1042434
        %v815 = vsel %vm814, %v813, %v812
        %v816 = vrot.slane %v791, 5
        %vm817 = vcmask 1043459
        %v818 = vsel %vm817, %v816, %v815
        %v819 = vrot.slane %v792, 4
        %vm820 = vcmask 1044484
        %v821 = vsel %vm820, %v819, %v818
        %v822 = vrot.slane %v793, 3
        %vm823 = vcmask 1045509
        %v824 = vsel %vm823, %v822, %v821
        %v825 = vrot.slane %v794, 2
        %vm826 = vcmask 1046534
        %v827 = vsel %vm826, %v825, %v824
        %v828 = vrot.slane %v795, 1
        %vm829 = vcmask 1047559
        %v830 = vsel %vm829, %v828, %v827
        %vm832 = vcmask 1047808
        %833 = vrot.lane.b32.xlu0 %v830, 32
        %v834 = vpop.permute.xlu0 %833
        %v835 = vsel %vm832, %v834, %v830
        %836 = vrot.lane.b32.xlu0 %v835, 32
        %v837 = vpop.permute.xlu0 %836
        %v838 = vsel %vm832, %v837, %v830
        %v839 = vlaneseq
        %v840 = vshrl.u32 %v839, 7
        %v841 = vsub.s32 0, %v840
        %v842 = vrot.slane %v800, %v841
        %844 = vrot.lane.b32.xlu0 %v838, 97
        %v845 = vpop.permute.xlu0 %844
        %v847 = vmul.f32 %v842, %v845
        %v849 = vrot.slane %v847, 7
        %v850 = vrot.slane %v847, 1
        %v851 = vrot.slane %v847, 2
        %v852 = vrot.slane %v847, 3
        %v853 = vrot.slane %v847, 4
        %v854 = vrot.slane %v847, 5
        %v855 = vrot.slane %v847, 6
        %v864 = vadd.f32 %v788, %v849
        %v865 = vadd.f32 %v789, %v847
        %v866 = vadd.f32 %v790, %v850
        %v867 = vadd.f32 %v791, %v851
        %v868 = vadd.f32 %v792, %v852
        %v869 = vadd.f32 %v793, %v853
        %v870 = vadd.f32 %v794, %v854
        %v871 = vadd.f32 %v795, %v855
        %v872 = vrot.slane %v788, 2
        %v873 = vrot.slane %v789, 1
        %v874 = vsel %vm811, %v873, %v872
        %v875 = vsel %vm814, %v790, %v874
        %v876 = vrot.slane %v791, 7
        %v877 = vsel %vm817, %v876, %v875
        %v878 = vrot.slane %v792, 6
        %v879 = vsel %vm820, %v878, %v877
        %v880 = vrot.slane %v793, 5
        %v881 = vsel %vm823, %v880, %v879
        %v882 = vrot.slane %v794, 4
        %v883 = vsel %vm826, %v882, %v881
        %v884 = vrot.slane %v795, 3
        %v885 = vsel %vm829, %v884, %v883
        %887 = vrot.lane.b32.xlu0 %v885, 32
        %v888 = vpop.permute.xlu0 %887
        %v889 = vsel %vm832, %v888, %v885
        %890 = vrot.lane.b32.xlu0 %v889, 32
        %v891 = vpop.permute.xlu0 %890
        %v892 = vsel %vm832, %v891, %v885
        %v893 = vlaneseq
        %v894 = vshrl.u32 %v893, 7
        %v895 = vsub.s32 0, %v894
        %v896 = vrot.slane %v801, %v895
        %898 = vrot.lane.b32.xlu0 %v892, 127
        %v899 = vpop.permute.xlu0 %898
        %v901 = vmul.f32 %v896, %v899
        %v903 = vrot.slane %v901, 7
        %v904 = vrot.slane %v901, 1
        %v905 = vrot.slane %v901, 2
        %v906 = vrot.slane %v901, 3
        %v907 = vrot.slane %v901, 4
        %v908 = vrot.slane %v901, 5
        %v909 = vrot.slane %v901, 6
        %v918 = vadd.f32 %v864, %v903
        %v919 = vadd.f32 %v865, %v901
        %v920 = vadd.f32 %v866, %v904
        %v921 = vadd.f32 %v867, %v905
        %v922 = vadd.f32 %v868, %v906
        %v923 = vadd.f32 %v869, %v907
        %v924 = vadd.f32 %v870, %v908
        %v925 = vadd.f32 %v871, %v909
        %v926 = vlaneseq
        %v927 = vshrl.u32 %v926, 7
        %v928 = vsub.s32 0, %v927
        %v929 = vrot.slane %v796, %v928
        %v938 = vrot.slane %v918, 1
        %v939 = vsel %vm811, %v919, %v938
        %v940 = vrot.slane %v920, 7
        %v941 = vsel %vm814, %v940, %v939
        %v942 = vrot.slane %v921, 6
        %v943 = vsel %vm817, %v942, %v941
        %v944 = vrot.slane %v922, 5
        %v945 = vsel %vm820, %v944, %v943
        %v946 = vrot.slane %v923, 4
        %v947 = vsel %vm823, %v946, %v945
        %v948 = vrot.slane %v924, 3
        %v949 = vsel %vm826, %v948, %v947
        %v950 = vrot.slane %v925, 2
        %v951 = vsel %vm829, %v950, %v949
        %v953 = vmul.f32 %v929, %v951
        %v954 = vlaneseq
        %v955 = vshrl.u32 %v954, 7
        %v956 = vsub.s32 0, %v955
        %v957 = vrot.slane %v797, %v956
        %v958 = vadd.f32 %v953, %v957
        %v959 = vmax.f32 %v958, 0.0
        %v960 = vlaneseq
        %v961 = vshrl.u32 %v960, 7
        %v962 = vsub.s32 0, %v961
        %v963 = vrot.slane %v798, %v962
        %v964 = vmul.f32 %v963, %v959
        %v965 = vlaneseq
        %v966 = vshrl.u32 %v965, 7
        %v967 = vsub.s32 0, %v966
        %v968 = vrot.slane %v799, %v967
        %v969 = vadd.f32 %v964, %v968
        %v970 = vmax.f32 %v969, 0.0
        %vm971 = vcmask 261120
        %972 = vst.msk [vmem:[%s213] sm:$0xff] %vm971, %v970
        %s973 = sand.u32 %s97, 1
        %s974 = scalar_lea.sflag [#allocation4], %s973
        %s975 = sand.u32 %s97, 1
        %s976 = smul.addr %s975, 8
        %s977 = scalar_lea.vmem [#allocation8], %s976
        // Predicated region
        $region45: #{tpu_custom_call.1} parent=31 // pred_check
          %p978 = pneg %p107
        $region46: #{tpu_custom_call.1} parent=31 // pred_check_branch
          %980 = sbr.rel (%p978) target = $region48
        $region47: #{tpu_custom_call.1} parent=31 // pred_region
          %s982 = ssub.s32 128, 128
          %983 = vsyncadd %s974, %s982
          %s984 = smul.addr %s21, 128
          %s985 = scalar_lea.hbm %s3, %s984
          %s987 = sshll.u32 %s977, 4
          %s988 = int_to_ptr.vmem [resolvable:$true] %s987
          %990 = dma.vmem_to_hbm [thread:$0]  %s988, 128, %s985, %s974
        $region48: #{tpu_custom_call.1} parent=31 // pred_fallthru
          _
      $region32: #{tpu_custom_call.1} parent=5 // pred_fallthru
        _
      %p991 = scmp.le.s32.totalorder 2, %s16
      // Predicated region
      $region49: #{tpu_custom_call.1} parent=5 // pred_check
        %p992 = pneg %p991
      $region50: #{tpu_custom_call.1} parent=5 // pred_check_branch
        %994 = sbr.rel (%p992) target = $region52
      $region51: #{tpu_custom_call.1} parent=5 // pred_region
        %s995 = ssub.s32 %s16, 2
        // Predicated region
        $region53: #{tpu_custom_call.1} parent=51 // pred_check
          %p996 = pneg %p113
        $region54: #{tpu_custom_call.1} parent=51 // pred_check_branch
          %998 = sbr.rel (%p996) target = $region56
        $region55: #{tpu_custom_call.1} parent=51 // pred_region
          %s999 = sand.u32 %s98, 1
          %s1000 = scalar_lea.sflag [#allocation4], %s999
          %s1001 = sand.u32 %s98, 1
          %s1002 = smul.addr %s1001, 8
          %s1003 = scalar_lea.vmem [#allocation8], %s1002
          %1004 = dma.done %s1000, 128
        $region56: #{tpu_custom_call.1} parent=51 // pred_fallthru
          _
      $region52: #{tpu_custom_call.1} parent=5 // pred_fallthru
        _
    $region6: #{tpu_custom_call.1} parent=1 // loop_footer
      %s20 = sadd.s32 1, %s16
    $region7: #{tpu_custom_call.1} parent=1 // loop_footer_branch
      %15 = sbr.rel target = $region3
    $region8: #{tpu_custom_call.1} parent=1 // loop_exit
      _
    %1005 = vsyncpa [#allocation3], 1
    %s1006 = scalar_lea.sflag [#allocation3], 1
    %1007 = vsyncpa %s1006, 1
    %1008 = vsyncpa [#allocation6], 1
    %1009 = vsyncpa [#allocation4], 1
    %s1010 = scalar_lea.sflag [#allocation4], 1
    %1011 = vsyncpa %s1010, 1

</llo_original>
